<compile_context>
chip_gen: v7x
topology: tpu7x:2x2x1
jax: 0.10.0
libtpu: 0.0.40
codegen_flags: <defaults>
</compile_context>

<pallas_src>
import functools
import math

import jax
import jax.numpy as jnp
from jax.experimental import pallas as pl
from jax.experimental.pallas import tpu as pltpu


def _combine_kernel(x_ref, y_ref, w_ref, b_ref, o_ref, *, scale):
    # x_ref / y_ref / o_ref: (TB, S, Dp) blocks; w_ref: (Dp, Dp); b_ref: (1, Dp)
    x = x_ref[...]                       # (TB, S, Dp) f32
    yv = y_ref[...]                      # (TB, S, Dp) f32
    w = w_ref[...]                       # (Dp, Dp)    f32
    b = b_ref[...]                       # (1, Dp)     f32

    tb, s_len, dp = x.shape

    # bf16 MXU operands, f32 accumulation.
    x_bf = x.astype(jnp.bfloat16)
    w_bf = w.astype(jnp.bfloat16)
    y_bf = yv.astype(jnp.bfloat16)

    # net(x): Linear + bias + ReLU.  Flatten (TB, S) -> rows for a plain 2-D
    # MXU matmul (last dim unchanged, so the reshape is layout-free).
    h = jnp.dot(x_bf.reshape(tb * s_len, dp), w_bf,
                preferred_element_type=jnp.float32).reshape(tb, s_len, dp)
    h = jnp.maximum(h + b, 0.0)          # f32 element-wise (VPU)

    # generalization(h, y): cross-attention, q = h, k = v = y.
    # Contraction on the last axis of both operands -> no explicit transpose.
    s = jnp.einsum("bqd,bkd->bqk", h.astype(jnp.bfloat16), y_bf,
                   preferred_element_type=jnp.float32) * scale   # (TB, S, S)

    m = jnp.max(s, axis=-1, keepdims=True)
    p = jnp.exp(s - m)
    p = p * pl.reciprocal(jnp.sum(p, axis=-1, keepdims=True), approx=True)

    o = jnp.einsum("bqk,bkd->bqd", p.astype(jnp.bfloat16), y_bf,
                   preferred_element_type=jnp.float32)           # (TB, S, Dp)
    o_ref[...] = o.astype(o_ref.dtype)


def combine_forward(x, y, w, b, *, batch_tile=8):
    """x, y: (B, S, D) float32; w: (D, D); b: (D,). Returns (attn_out, y)."""
    B, S, D = x.shape
    scale = 1.0 / math.sqrt(D)           # scale uses the *original* hidden dim

    # Lane-dense layout: pad hidden dim up to a multiple of 128.
    Dp = ((D + 127) // 128) * 128
    pad = Dp - D
    if pad:
        x_p = jnp.pad(x, ((0, 0), (0, 0), (0, pad)))
        y_p = jnp.pad(y, ((0, 0), (0, 0), (0, pad)))
        w_p = jnp.pad(w, ((0, pad), (0, pad)))
        b_p = jnp.pad(b, ((0, pad),))
    else:
        x_p, y_p, w_p, b_p = x, y, w, b

    # Batch-tile: several batches per grid step to amortize per-step overhead.
    tb = max(1, min(batch_tile, B))
    while B % tb:                        # TB must divide B
        tb -= 1
    grid = (B // tb,)

    out = pl.pallas_call(
        functools.partial(_combine_kernel, scale=scale),
        out_shape=jax.ShapeDtypeStruct((B, S, Dp), x.dtype),
        grid=grid,
        in_specs=[
            pl.BlockSpec((tb, S, Dp), lambda i: (i, 0, 0)),   # x   (per tile)
            pl.BlockSpec((tb, S, Dp), lambda i: (i, 0, 0)),   # y   (k = v)
            pl.BlockSpec((Dp, Dp), lambda i: (0, 0)),         # weight (resident)
            pl.BlockSpec((1, Dp), lambda i: (0, 0)),          # bias   (resident)
        ],
        out_specs=pl.BlockSpec((tb, S, Dp), lambda i: (i, 0, 0)),
        compiler_params=pltpu.CompilerParams(
            dimension_semantics=("parallel",)),                # megacore on v7x
    )(x_p, y_p, w_p, b_p.reshape(1, Dp))

    if pad:
        out = out[..., :D]               # drop padded lanes (exact)
    return out, y


def _reference(x, y, w, b):
    h = jnp.maximum(jnp.einsum("bsd,de->bse", x, w) + b, 0.0)
    s = jnp.einsum("bsd,btd->bst", h, y) / jnp.sqrt(jnp.float32(x.shape[-1]))
    p = jax.nn.softmax(s, axis=-1)
    return jnp.einsum("bst,btd->bsd", p, y), y


if __name__ == "__main__":
    B, S, D = 2, 8, 32
    key = jax.random.PRNGKey(0)
    kx, ky, kw = jax.random.split(key, 3)

    x = jax.random.normal(kx, (B, S, D), dtype=jnp.float32)
    y = jax.random.normal(ky, (B, S, D), dtype=jnp.float32)
    # Deterministic parameter init (nn.Linear(D, D)-shaped weight + bias).
    w = jax.random.normal(kw, (D, D), dtype=jnp.float32) * 0.02
    b = jnp.zeros((D,), dtype=jnp.float32)

    out_x, out_y = combine_forward(x, y, w, b)
    jax.block_until_ready((out_x, out_y))

    ref_x, ref_y = _reference(x, y, w, b)
    # Tolerance loosened for bf16 MXU inputs + approx reciprocal.
    err = float(jnp.max(jnp.abs(out_x - ref_x)))
    assert jnp.allclose(out_x, ref_x, atol=2e-2, rtol=2e-2), err
    assert jnp.allclose(out_y, ref_y)

    print("KERNEL_OK")
</pallas_src>

<mosaic_0001>
module attributes {stable_mosaic.version = 11 : i64} {
  func.func @_combine_kernel(%arg0: i32, %arg1: memref<2x8x128xf32, #tpu.memory_space<vmem>>, %arg2: memref<2x8x128xf32, #tpu.memory_space<vmem>>, %arg3: memref<128x128xf32, #tpu.memory_space<vmem>>, %arg4: memref<1x128xf32, #tpu.memory_space<vmem>>, %arg5: memref<2x8x128xf32, #tpu.memory_space<vmem>>) attributes {dimension_semantics = [#tpu.dimension_semantics<parallel>], iteration_bounds = array<i64: 1>, scalar_prefetch = 0 : i64, scratch_operands = 0 : i64, tpu.core_type = #tpu.core_type<tc>, window_params = [{transform_indices = @transform_0, window_bounds = array<i64: 2, 8, 128>}, {transform_indices = @transform_1, window_bounds = array<i64: 2, 8, 128>}, {pipeline_mode = #tpu.pipeline_mode<synchronous>, transform_indices = @transform_2, window_bounds = array<i64: 128, 128>}, {pipeline_mode = #tpu.pipeline_mode<synchronous>, transform_indices = @transform_3, window_bounds = array<i64: 1, 128>}, {transform_indices = @transform_4, window_bounds = array<i64: 2, 8, 128>}]} {
    %c0 = arith.constant 0 : index
    %c0_0 = arith.constant 0 : index
    %c0_1 = arith.constant 0 : index
    %0 = vector.load %arg1[%c0, %c0_0, %c0_1] : memref<2x8x128xf32, #tpu.memory_space<vmem>>, vector<2x8x128xf32>
    %c0_2 = arith.constant 0 : index
    %c0_3 = arith.constant 0 : index
    %c0_4 = arith.constant 0 : index
    %1 = vector.load %arg2[%c0_2, %c0_3, %c0_4] : memref<2x8x128xf32, #tpu.memory_space<vmem>>, vector<2x8x128xf32>
    %c0_5 = arith.constant 0 : index
    %c0_6 = arith.constant 0 : index
    %2 = vector.load %arg3[%c0_5, %c0_6] : memref<128x128xf32, #tpu.memory_space<vmem>>, vector<128x128xf32>
    %c0_7 = arith.constant 0 : index
    %c0_8 = arith.constant 0 : index
    %3 = vector.load %arg4[%c0_7, %c0_8] : memref<1x128xf32, #tpu.memory_space<vmem>>, vector<1x128xf32>
    %4 = arith.truncf %0 : vector<2x8x128xf32> to vector<2x8x128xbf16>
    %5 = arith.truncf %2 : vector<128x128xf32> to vector<128x128xbf16>
    %6 = arith.truncf %1 : vector<2x8x128xf32> to vector<2x8x128xbf16>
    %7 = vector.shape_cast %4 : vector<2x8x128xbf16> to vector<16x128xbf16>
    %cst = arith.constant dense<0.000000e+00> : vector<16x128xf32>
    %8 = tpu.matmul %7, %5, %cst {dimension_numbers = #tpu.dot_dimension_numbers<[1], [0], [0], [1], [0, 0, 1, 1], [], []>} : vector<16x128xbf16>, vector<128x128xbf16>, vector<16x128xf32> -> vector<16x128xf32>
    %9 = vector.shape_cast %8 : vector<16x128xf32> to vector<2x8x128xf32>
    %10 = vector.shape_cast %3 : vector<1x128xf32> to vector<1x1x128xf32>
    %11 = vector.broadcast %10 : vector<1x1x128xf32> to vector<2x8x128xf32>
    %12 = arith.addf %9, %11 : vector<2x8x128xf32>
    %cst_9 = arith.constant 0.000000e+00 : f32
    %13 = vector.broadcast %cst_9 : f32 to vector<2x8x128xf32>
    %14 = arith.maximumf %12, %13 : vector<2x8x128xf32>
    %15 = arith.truncf %14 : vector<2x8x128xf32> to vector<2x8x128xbf16>
    "tpu.trace_start"() <{level = 10 : i32, message = "bqd,bkd->bqk"}> : () -> ()
    %cst_10 = arith.constant dense<0.000000e+00> : vector<2x8x8xf32>
    %16 = tpu.matmul %15, %6, %cst_10 {dimension_numbers = #tpu.dot_dimension_numbers<[2], [2], [1], [1], [0, 0, 0, 1, 1, 1], [0], [0]>} : vector<2x8x128xbf16>, vector<2x8x128xbf16>, vector<2x8x8xf32> -> vector<2x8x8xf32>
    "tpu.trace_stop"() : () -> ()
    %cst_11 = arith.constant 0.176776692 : f32
    %17 = vector.broadcast %cst_11 : f32 to vector<2x8x8xf32>
    %18 = arith.mulf %16, %17 : vector<2x8x8xf32>
    %cst_12 = arith.constant dense<0xFF800000> : vector<2x8xf32>
    %19 = vector.multi_reduction <maximumf>, %18, %cst_12 [2] : vector<2x8x8xf32> to vector<2x8xf32>
    %20 = vector.shape_cast %19 : vector<2x8xf32> to vector<2x8x1xf32>
    %21 = vector.broadcast %20 : vector<2x8x1xf32> to vector<2x8x8xf32>
    %22 = arith.subf %18, %21 : vector<2x8x8xf32>
    %23 = math.exp %22 : vector<2x8x8xf32>
    %cst_13 = arith.constant dense<0.000000e+00> : vector<2x8xf32>
    %24 = vector.multi_reduction <add>, %23, %cst_13 [2] : vector<2x8x8xf32> to vector<2x8xf32>
    %25 = vector.shape_cast %24 : vector<2x8xf32> to vector<2x8x1xf32>
    %26 = tpu.reciprocal %25 {approx = true} : vector<2x8x1xf32> -> vector<2x8x1xf32>
    %27 = vector.broadcast %26 : vector<2x8x1xf32> to vector<2x8x8xf32>
    %28 = arith.mulf %23, %27 : vector<2x8x8xf32>
    %29 = arith.truncf %28 : vector<2x8x8xf32> to vector<2x8x8xbf16>
    "tpu.trace_start"() <{level = 10 : i32, message = "bqk,bkd->bqd"}> : () -> ()
    %cst_14 = arith.constant dense<0.000000e+00> : vector<2x8x128xf32>
    %30 = tpu.matmul %29, %6, %cst_14 {dimension_numbers = #tpu.dot_dimension_numbers<[2], [1], [1], [2], [0, 0, 0, 1, 1, 2], [0], [0]>} : vector<2x8x8xbf16>, vector<2x8x128xbf16>, vector<2x8x128xf32> -> vector<2x8x128xf32>
    "tpu.trace_stop"() : () -> ()
    %c0_15 = arith.constant 0 : index
    %c0_16 = arith.constant 0 : index
    %c0_17 = arith.constant 0 : index
    %31 = vector.load %arg5[%c0_15, %c0_16, %c0_17] : memref<2x8x128xf32, #tpu.memory_space<vmem>>, vector<2x8x128xf32>
    tpu.vector_store %arg5[%c0_15, %c0_16, %c0_17], %30 {strides = array<i32>} : memref<2x8x128xf32, #tpu.memory_space<vmem>>, vector<2x8x128xf32>,
    return
  }
  func.func @transform_0(%arg0: i32) -> (i32, i32, i32) {
    %c0_i32 = arith.constant 0 : i32
    %c0_i32_0 = arith.constant 0 : i32
    %c0_i32_1 = arith.constant 0 : i32
    return %arg0, %c0_i32, %c0_i32_0 : i32, i32, i32
  }
  func.func @transform_1(%arg0: i32) -> (i32, i32, i32) {
    %c0_i32 = arith.constant 0 : i32
    %c0_i32_0 = arith.constant 0 : i32
    %c0_i32_1 = arith.constant 0 : i32
    return %arg0, %c0_i32, %c0_i32_0 : i32, i32, i32
  }
  func.func @transform_2(%arg0: i32) -> (i32, i32) {
    %c0_i32 = arith.constant 0 : i32
    %c0_i32_0 = arith.constant 0 : i32
    %c0_i32_1 = arith.constant 0 : i32
    return %c0_i32, %c0_i32_0 : i32, i32
  }
  func.func @transform_3(%arg0: i32) -> (i32, i32) {
    %c0_i32 = arith.constant 0 : i32
    %c0_i32_0 = arith.constant 0 : i32
    %c0_i32_1 = arith.constant 0 : i32
    return %c0_i32, %c0_i32_0 : i32, i32
  }
  func.func @transform_4(%arg0: i32) -> (i32, i32, i32) {
    %c0_i32 = arith.constant 0 : i32
    %c0_i32_0 = arith.constant 0 : i32
    %c0_i32_1 = arith.constant 0 : i32
    return %arg0, %c0_i32, %c0_i32_0 : i32, i32, i32
  }
}

</mosaic_0001>

<llo_original>
// kernel: tpu_custom_call.1
$region0: #{tpu_custom_call.1}
  #allocation0 [shape = 'u32[]', space=smem, size = 0x4, offset = 0x4, fixed_abs, tag = 'smem constant byte address 0x4 - core index']
  #allocation1 [shape = 'u32[144,128]{1,0:T(1,128)}', space=vmem, size = 0x12000, scoped, tag = 'internal scratch']
  %s0 = inlined_call_operand.hbm [shape: f32[2,8,128], index: 0, kind: input, shape index: {}]
  %s1 = inlined_call_operand.hbm [shape: f32[2,8,128], index: 1, kind: input, shape index: {}]
  %s2 = inlined_call_operand.hbm [shape: f32[128,128], index: 2, kind: input, shape index: {}]
  %s3 = inlined_call_operand.vmem [shape: f32[1,128], index: 3, kind: input, shape index: {}]
  %s4 = inlined_call_operand.hbm [shape: f32[2,8,128], index: 4, kind: output, shape index: {}]
  %s5 = sld [smem:[#allocation0]]
  $region38: #{tpu_custom_call.1} parent=0
    _
  %s7 = ssub.s32 1, %s5
  %s8 = scalar_select 0, %s7, %s5
  $region1: #{tpu_custom_call.1} parent=0
    #allocation2 [shape = 'u8[8192]{0}', space=vmem, size = 0x2000, scoped, tag = 'input window, operand 0, single buffered']
    #allocation3 [shape = 's32[1]{0}', space=sflag, size = 0x4, scoped, tag = 'scoped memory for tpu_custom_call.1']
    #allocation4 [shape = 's32[1]{0}', space=sflag, size = 0x4, scoped, tag = 'scoped memory for tpu_custom_call.1']
    #allocation5 [shape = 'u8[8192]{0}', space=vmem, size = 0x2000, scoped, tag = 'input window, operand 1, single buffered']
    #allocation6 [shape = 's32[1]{0}', space=sflag, size = 0x4, scoped, tag = 'scoped memory for tpu_custom_call.1']
    #allocation7 [shape = 'u8[65536]{0}', space=vmem, size = 0x10000, scoped, tag = 'input window, operand 2, single buffered']
    #allocation8 [shape = 'u8[8192]{0}', space=vmem, size = 0x2000, scoped, tag = 'output window, operand 0, single buffered']
    %9 = vsyncpa [#allocation3], 0
    %10 = vsyncpa [#allocation6], 0
    %11 = vsyncpa [#allocation4], 0
    // Predicated region
    $region2: #{tpu_custom_call.1} parent=1 // pred_check
      _
    $region3: #{tpu_custom_call.1} parent=1 // pred_check_branch
      %13 = sbr.rel (0) target = $region5
    $region4: #{tpu_custom_call.1} parent=1 // pred_region
      %s15 = ssub.s32 256, 256
      %16 = vsyncadd [#allocation3], %s15
      %s17 = sshll.u32 [#allocation2], 4
      %s18 = int_to_ptr.vmem [resolvable:$true] %s17
      %23 = dma.hbm_to_vmem [thread:$0]  %s0, 256, %s18, [#allocation3], 128, 128, 8
    $region5: #{tpu_custom_call.1} parent=1 // pred_fallthru
      _
    // Predicated region
    $region6: #{tpu_custom_call.1} parent=1 // pred_check
      _
    $region7: #{tpu_custom_call.1} parent=1 // pred_check_branch
      %25 = sbr.rel (0) target = $region9
    $region8: #{tpu_custom_call.1} parent=1 // pred_region
      %s27 = ssub.s32 256, 256
      %28 = vsyncadd [#allocation6], %s27
      %s29 = sshll.u32 [#allocation5], 4
      %s30 = int_to_ptr.vmem [resolvable:$true] %s29
      %35 = dma.hbm_to_vmem [thread:$0]  %s1, 256, %s30, [#allocation6], 128, 128, 8
    $region9: #{tpu_custom_call.1} parent=1 // pred_fallthru
      _
    // Predicated region
    $region10: #{tpu_custom_call.1} parent=1 // pred_check
      _
    $region11: #{tpu_custom_call.1} parent=1 // pred_check_branch
      %37 = sbr.rel (0) target = $region13
    $region12: #{tpu_custom_call.1} parent=1 // pred_region
      %s39 = ssub.s32 2048, 2048
      %40 = vsyncadd [#allocation6], %s39
      %s41 = sshll.u32 [#allocation7], 4
      %s42 = int_to_ptr.vmem [resolvable:$true] %s41
      %47 = dma.hbm_to_vmem [thread:$0]  %s2, 2048, %s42, [#allocation6], 128, 128, 8
    $region13: #{tpu_custom_call.1} parent=1 // pred_fallthru
      _
    // Predicated region
    $region14: #{tpu_custom_call.1} parent=1 // pred_check
      _
    $region15: #{tpu_custom_call.1} parent=1 // pred_check_branch
      %49 = sbr.rel (0) target = $region17
    $region16: #{tpu_custom_call.1} parent=1 // pred_region
      _
    $region17: #{tpu_custom_call.1} parent=1 // pred_fallthru
      _
    // Predicated region
    $region18: #{tpu_custom_call.1} parent=1 // pred_check
      _
    $region19: #{tpu_custom_call.1} parent=1 // pred_check_branch
      %51 = sbr.rel (0) target = $region21
    $region20: #{tpu_custom_call.1} parent=1 // pred_region
      %52 = dma.done [#allocation3], 256
    $region21: #{tpu_custom_call.1} parent=1 // pred_fallthru
      _
    // Predicated region
    $region22: #{tpu_custom_call.1} parent=1 // pred_check
      _
    $region23: #{tpu_custom_call.1} parent=1 // pred_check_branch
      %54 = sbr.rel (0) target = $region25
    $region24: #{tpu_custom_call.1} parent=1 // pred_region
      %55 = dma.done [#allocation6], 256
    $region25: #{tpu_custom_call.1} parent=1 // pred_fallthru
      _
    // Predicated region
    $region26: #{tpu_custom_call.1} parent=1 // pred_check
      _
    $region27: #{tpu_custom_call.1} parent=1 // pred_check_branch
      %57 = sbr.rel (0) target = $region29
    $region28: #{tpu_custom_call.1} parent=1 // pred_region
      %58 = dma.done [#allocation6], 2048
    $region29: #{tpu_custom_call.1} parent=1 // pred_fallthru
      _
    %v60 = vld [vmem:[#allocation2] sm:$0xff]
    %v61 = vld [vmem:[#allocation2 + $0x8] sm:$0xff]
    %v62 = vld [vmem:[#allocation5] sm:$0xff]
    %v63 = vld [vmem:[#allocation5 + $0x8] sm:$0xff]
    %v64 = vld [vmem:[#allocation7] sm:$0xff]
    %v65 = vld [vmem:[#allocation7 + $0x8] sm:$0xff]
    %v66 = vld [vmem:[#allocation7 + $0x10] sm:$0xff]
    %v67 = vld [vmem:[#allocation7 + $0x18] sm:$0xff]
    %v68 = vld [vmem:[#allocation7 + $0x20] sm:$0xff]
    %v69 = vld [vmem:[#allocation7 + $0x28] sm:$0xff]
    %v70 = vld [vmem:[#allocation7 + $0x30] sm:$0xff]
    %v71 = vld [vmem:[#allocation7 + $0x38] sm:$0xff]
    %v72 = vld [vmem:[#allocation7 + $0x40] sm:$0xff]
    %v73 = vld [vmem:[#allocation7 + $0x48] sm:$0xff]
    %v74 = vld [vmem:[#allocation7 + $0x50] sm:$0xff]
    %v75 = vld [vmem:[#allocation7 + $0x58] sm:$0xff]
    %v76 = vld [vmem:[#allocation7 + $0x60] sm:$0xff]
    %v77 = vld [vmem:[#allocation7 + $0x68] sm:$0xff]
    %v78 = vld [vmem:[#allocation7 + $0x70] sm:$0xff]
    %v79 = vld [vmem:[#allocation7 + $0x78] sm:$0xff]
    %v80 = vld [vmem:[%s3] sm:$0x1]
    %v81 = vpack.c.bf16 %v60, %v60
    %v82 = vpack.c.bf16 %v61, %v61
    %v83 = vpack.c.bf16 %v65, %v64
    %v84 = vpack.c.bf16 %v67, %v66
    %v85 = vpack.c.bf16 %v69, %v68
    %v86 = vpack.c.bf16 %v71, %v70
    %v87 = vpack.c.bf16 %v73, %v72
    %v88 = vpack.c.bf16 %v75, %v74
    %v89 = vpack.c.bf16 %v77, %v76
    %v90 = vpack.c.bf16 %v79, %v78
    %v91 = vpack.c.bf16 %v62, %v62
    %v92 = vpack.c.bf16 %v63, %v63
    %v95 = vunpack.c.l.b16 %v81
    %v96 = vunpack.c.l.b16 %v82
    %v97 = vpack.c.b16 %v96, %v95
    %99 = vmatprep.subr.bf16.mxu0 0
    %100 = vmatpush1.bf16.msra.mxu0 %v83
    %101 = vmatprep.subr.bf16.mxu0 0
    %102 = vmatpush1.bf16.msra.mxu0 %v84
    %103 = vmatprep.subr.bf16.mxu0 0
    %104 = vmatpush1.bf16.msra.mxu0 %v85
    %105 = vmatprep.subr.bf16.mxu0 0
    %106 = vmatpush1.bf16.msra.mxu0 %v86
    %107 = vmatprep.subr.bf16.mxu0 0
    %108 = vmatpush1.bf16.msra.mxu0 %v87
    %109 = vmatprep.subr.bf16.mxu0 0
    %110 = vmatpush1.bf16.msra.mxu0 %v88
    %111 = vmatprep.subr.bf16.mxu0 0
    %112 = vmatpush1.bf16.msra.mxu0 %v89
    %113 = vmatprep.subr.bf16.mxu0 0
    %114 = vmatpush1.bf16.msra.mxu0 %v90
    %115 = vmatprep.subr.bf16.mxu0 0
    %116 = vmatpush1.bf16.msra.mxu0 0
    %117 = vmatprep.subr.bf16.mxu0 0
    %118 = vmatpush1.bf16.msra.mxu0 0
    %119 = vmatprep.subr.bf16.mxu0 0
    %120 = vmatpush1.bf16.msra.mxu0 0
    %121 = vmatprep.subr.bf16.mxu0 0
    %122 = vmatpush1.bf16.msra.mxu0 0
    %123 = vmatprep.subr.bf16.mxu0 0
    %124 = vmatpush1.bf16.msra.mxu0 0
    %125 = vmatprep.subr.bf16.mxu0 0
    %126 = vmatpush1.bf16.msra.mxu0 0
    %127 = vmatprep.subr.bf16.mxu0 0
    %128 = vmatpush1.bf16.msra.mxu0 0
    %129 = vmatprep.subr.bf16.mxu0 0
    %130 = vmatpush1.bf16.msra.mxu0 0
    %131 = vmatprep.mubr.bf16.mxu0 0
    %132 = vmatmul.mubr.bf16.gmra.mrb[0].mxu0 %v97
    %v133 = vpop.f32.mrb[0].mxu0
    %v134 = vadd.f32 0.0, %v133
    %v135 = vpop.f32.mrb[0].mxu0
    %v136 = vpop.f32.mrb[0].mxu0
    %v137 = vadd.f32 0.0, %v136
    %v138 = vpop.f32.mrb[0].mxu0
    %139 = vdwg.mxu0
    %v141 = vlaneseq
    %v142 = vshrl.u32 %v141, 7
    %v143 = vsub.s32 0, %v142
    %v144 = vrot.slane %v80, %v143
    %v146 = vadd.f32 %v134, %v144
    %v147 = vadd.f32 %v137, %v144
    %v148 = vmax.f32 %v146, 0.0
    %v149 = vmax.f32 %v147, 0.0
    %v150 = vpack.c.bf16 %v148, %v148
    %v151 = vpack.c.bf16 %v149, %v149
    %152 = vmatprep.subr.bf16.mxu0 0
    %153 = vmatpush1.bf16.xpose.msra.mxu0 %v91
    %154 = vmatprep.subr.bf16.mxu0 0
    %155 = vmatpush1.bf16.xpose.msra.mxu0 0
    %156 = vmatprep.subr.bf16.mxu0 0
    %157 = vmatpush1.bf16.xpose.msra.mxu0 0
    %158 = vmatprep.subr.bf16.mxu0 0
    %159 = vmatpush1.bf16.xpose.msra.mxu0 0
    %160 = vmatprep.subr.bf16.mxu0 0
    %161 = vmatpush1.bf16.xpose.msra.mxu0 0
    %162 = vmatprep.subr.bf16.mxu0 0
    %163 = vmatpush1.bf16.xpose.msra.mxu0 0
    %164 = vmatprep.subr.bf16.mxu0 0
    %165 = vmatpush1.bf16.xpose.msra.mxu0 0
    %166 = vmatprep.subr.bf16.mxu0 0
    %167 = vmatpush1.bf16.xpose.msra.mxu0 0
    %168 = vmatprep.subr.bf16.mxu0 0
    %169 = vmatpush1.bf16.xpose.msra.mxu0 0
    %170 = vmatprep.subr.bf16.mxu0 0
    %171 = vmatpush1.bf16.xpose.msra.mxu0 0
    %172 = vmatprep.subr.bf16.mxu0 0
    %173 = vmatpush1.bf16.xpose.msra.mxu0 0
    %174 = vmatprep.subr.bf16.mxu0 0
    %175 = vmatpush1.bf16.xpose.msra.mxu0 0
    %176 = vmatprep.subr.bf16.mxu0 0
    %177 = vmatpush1.bf16.xpose.msra.mxu0 0
    %178 = vmatprep.subr.bf16.mxu0 0
    %179 = vmatpush1.bf16.xpose.msra.mxu0 0
    %180 = vmatprep.subr.bf16.mxu0 0
    %181 = vmatpush1.bf16.xpose.msra.mxu0 0
    %182 = vmatprep.subr.bf16.mxu0 0
    %183 = vmatpush1.bf16.xpose.msra.mxu0 0
    %184 = vmatprep.mubr.bf16.mxu0 0
    %185 = vmatmul.mubr.bf16.gmra.mrb[0].mxu0 %v150
    %v186 = vpop.f32.mrb[0].mxu0
    %v187 = vadd.f32 0.0, %v186
    %v188 = vpop.f32.mrb[0].mxu0
    %v189 = vpop.f32.mrb[0].mxu0
    %v190 = vpop.f32.mrb[0].mxu0
    %191 = vdwg.mxu0
    %192 = vmatprep.subr.bf16.mxu0 0
    %193 = vmatpush1.bf16.xpose.msra.mxu0 %v92
    %194 = vmatprep.subr.bf16.mxu0 0
    %195 = vmatpush1.bf16.xpose.msra.mxu0 0
    %196 = vmatprep.subr.bf16.mxu0 0
    %197 = vmatpush1.bf16.xpose.msra.mxu0 0
    %198 = vmatprep.subr.bf16.mxu0 0
    %199 = vmatpush1.bf16.xpose.msra.mxu0 0
    %200 = vmatprep.subr.bf16.mxu0 0
    %201 = vmatpush1.bf16.xpose.msra.mxu0 0
    %202 = vmatprep.subr.bf16.mxu0 0
    %203 = vmatpush1.bf16.xpose.msra.mxu0 0
    %204 = vmatprep.subr.bf16.mxu0 0
    %205 = vmatpush1.bf16.xpose.msra.mxu0 0
    %206 = vmatprep.subr.bf16.mxu0 0
    %207 = vmatpush1.bf16.xpose.msra.mxu0 0
    %208 = vmatprep.subr.bf16.mxu0 0
    %209 = vmatpush1.bf16.xpose.msra.mxu0 0
    %210 = vmatprep.subr.bf16.mxu0 0
    %211 = vmatpush1.bf16.xpose.msra.mxu0 0
    %212 = vmatprep.subr.bf16.mxu0 0
    %213 = vmatpush1.bf16.xpose.msra.mxu0 0
    %214 = vmatprep.subr.bf16.mxu0 0
    %215 = vmatpush1.bf16.xpose.msra.mxu0 0
    %216 = vmatprep.subr.bf16.mxu0 0
    %217 = vmatpush1.bf16.xpose.msra.mxu0 0
    %218 = vmatprep.subr.bf16.mxu0 0
    %219 = vmatpush1.bf16.xpose.msra.mxu0 0
    %220 = vmatprep.subr.bf16.mxu0 0
    %221 = vmatpush1.bf16.xpose.msra.mxu0 0
    %222 = vmatprep.subr.bf16.mxu0 0
    %223 = vmatpush1.bf16.xpose.msra.mxu0 0
    %224 = vmatprep.mubr.bf16.mxu0 0
    %225 = vmatmul.mubr.bf16.gmra.mrb[0].mxu0 %v151
    %v226 = vpop.f32.mrb[0].mxu0
    %v227 = vadd.f32 0.0, %v226
    %v228 = vpop.f32.mrb[0].mxu0
    %v229 = vpop.f32.mrb[0].mxu0
    %v230 = vpop.f32.mrb[0].mxu0
    %231 = vdwg.mxu0
    %v232 = vmul.f32 %v187, 0.17677669
    %v233 = vmul.f32 %v227, 0.17677669
    %vm234 = vcmask 64512
    %v235 = vsel %vm234, %v232, -inf
    %236 = vmax.xlane.f32.xlu0 %v235
    %v237 = vpop.xlane.xlu0 %236
    %v238 = vsel %vm234, %v233, -inf
    %239 = vmax.xlane.f32.xlu0 %v238
    %v240 = vpop.xlane.xlu0 %239
    %v241 = vsub.f32 %v232, %v237
    %v242 = vsub.f32 %v233, %v240
    %v243 = vmul.f32 %v241, 1.442695
    %v244 = vpow.pop %v243
    %v245 = vmul.f32 %v242, 1.442695
    %v246 = vpow.pop %v245
    %v247 = vsel %vm234, %v244, 0.0
    %248 = vadd.xlane.f32.xlu0 %v247
    %v249 = vpop.xlane.xlu0 %248
    %v250 = vsel %vm234, %v246, 0.0
    %251 = vadd.xlane.f32.xlu0 %v250
    %v252 = vpop.xlane.xlu0 %251
    %v253 = vrcp.pop %v249
    %v254 = vrcp.pop %v252
    %v255 = vmul.f32 %v244, %v253
    %v256 = vmul.f32 %v246, %v254
    %v257 = vpack.c.bf16 %v255, %v255
    %v258 = vpack.c.bf16 %v256, %v256
    %v260 = vsel %vm234, %v257, 0
    %vm262 = vcmask 1043456
    %v264 = vsel %vm262, %v91, 0
    %266 = vmatprep.subr.bf16.mxu0 0
    %267 = vmatpush1.bf16.msra.mxu0 %v264
    %268 = vmatprep.subr.bf16.mxu0 0
    %269 = vmatpush1.bf16.msra.mxu0 0
    %270 = vmatprep.subr.bf16.mxu0 0
    %271 = vmatpush1.bf16.msra.mxu0 0
    %272 = vmatprep.subr.bf16.mxu0 0
    %273 = vmatpush1.bf16.msra.mxu0 0
    %274 = vmatprep.subr.bf16.mxu0 0
    %275 = vmatpush1.bf16.msra.mxu0 0
    %276 = vmatprep.subr.bf16.mxu0 0
    %277 = vmatpush1.bf16.msra.mxu0 0
    %278 = vmatprep.subr.bf16.mxu0 0
    %279 = vmatpush1.bf16.msra.mxu0 0
    %280 = vmatprep.subr.bf16.mxu0 0
    %281 = vmatpush1.bf16.msra.mxu0 0
    %282 = vmatprep.subr.bf16.mxu0 0
    %283 = vmatpush1.bf16.msra.mxu0 0
    %284 = vmatprep.subr.bf16.mxu0 0
    %285 = vmatpush1.bf16.msra.mxu0 0
    %286 = vmatprep.subr.bf16.mxu0 0
    %287 = vmatpush1.bf16.msra.mxu0 0
    %288 = vmatprep.subr.bf16.mxu0 0
    %289 = vmatpush1.bf16.msra.mxu0 0
    %290 = vmatprep.subr.bf16.mxu0 0
    %291 = vmatpush1.bf16.msra.mxu0 0
    %292 = vmatprep.subr.bf16.mxu0 0
    %293 = vmatpush1.bf16.msra.mxu0 0
    %294 = vmatprep.subr.bf16.mxu0 0
    %295 = vmatpush1.bf16.msra.mxu0 0
    %296 = vmatprep.subr.bf16.mxu0 0
    %297 = vmatpush1.bf16.msra.mxu0 0
    %298 = vmatprep.mubr.bf16.mxu0 0
    %299 = vmatmul.mubr.bf16.gmra.mrb[0].mxu0 %v260
    %v300 = vpop.f32.mrb[0].mxu0
    %v301 = vadd.f32 0.0, %v300
    %v302 = vpop.f32.mrb[0].mxu0
    %v303 = vpop.f32.mrb[0].mxu0
    %v304 = vpop.f32.mrb[0].mxu0
    %305 = vdwg.mxu0
    %v307 = vsel %vm234, %v258, 0
    %v310 = vsel %vm262, %v92, 0
    %312 = vmatprep.subr.bf16.mxu0 0
    %313 = vmatpush1.bf16.msra.mxu0 %v310
    %314 = vmatprep.subr.bf16.mxu0 0
    %315 = vmatpush1.bf16.msra.mxu0 0
    %316 = vmatprep.subr.bf16.mxu0 0
    %317 = vmatpush1.bf16.msra.mxu0 0
    %318 = vmatprep.subr.bf16.mxu0 0
    %319 = vmatpush1.bf16.msra.mxu0 0
    %320 = vmatprep.subr.bf16.mxu0 0
    %321 = vmatpush1.bf16.msra.mxu0 0
    %322 = vmatprep.subr.bf16.mxu0 0
    %323 = vmatpush1.bf16.msra.mxu0 0
    %324 = vmatprep.subr.bf16.mxu0 0
    %325 = vmatpush1.bf16.msra.mxu0 0
    %326 = vmatprep.subr.bf16.mxu0 0
    %327 = vmatpush1.bf16.msra.mxu0 0
    %328 = vmatprep.subr.bf16.mxu0 0
    %329 = vmatpush1.bf16.msra.mxu0 0
    %330 = vmatprep.subr.bf16.mxu0 0
    %331 = vmatpush1.bf16.msra.mxu0 0
    %332 = vmatprep.subr.bf16.mxu0 0
    %333 = vmatpush1.bf16.msra.mxu0 0
    %334 = vmatprep.subr.bf16.mxu0 0
    %335 = vmatpush1.bf16.msra.mxu0 0
    %336 = vmatprep.subr.bf16.mxu0 0
    %337 = vmatpush1.bf16.msra.mxu0 0
    %338 = vmatprep.subr.bf16.mxu0 0
    %339 = vmatpush1.bf16.msra.mxu0 0
    %340 = vmatprep.subr.bf16.mxu0 0
    %341 = vmatpush1.bf16.msra.mxu0 0
    %342 = vmatprep.subr.bf16.mxu0 0
    %343 = vmatpush1.bf16.msra.mxu0 0
    %344 = vmatprep.mubr.bf16.mxu0 0
    %345 = vmatmul.mubr.bf16.gmra.mrb[0].mxu0 %v307
    %v346 = vpop.f32.mrb[0].mxu0
    %v347 = vadd.f32 0.0, %v346
    %v348 = vpop.f32.mrb[0].mxu0
    %v349 = vpop.f32.mrb[0].mxu0
    %v350 = vpop.f32.mrb[0].mxu0
    %351 = vdwg.mxu0
    %352 = vst [vmem:[#allocation8] sm:$0xff] %v301
    %353 = vst [vmem:[#allocation8 + $0x8] sm:$0xff] %v347
    // Predicated region
    $region30: #{tpu_custom_call.1} parent=1 // pred_check
      _
    $region31: #{tpu_custom_call.1} parent=1 // pred_check_branch
      %355 = sbr.rel (0) target = $region33
    $region32: #{tpu_custom_call.1} parent=1 // pred_region
      %s357 = ssub.s32 256, 256
      %358 = vsyncadd [#allocation4], %s357
      %s359 = sshll.u32 [#allocation8], 4
      %s360 = int_to_ptr.vmem [resolvable:$true] %s359
      %365 = dma.vmem_to_hbm [thread:$0]  %s360, 256, %s4, [#allocation4], 128, 128, 8
    $region33: #{tpu_custom_call.1} parent=1 // pred_fallthru
      _
    // Predicated region
    $region34: #{tpu_custom_call.1} parent=1 // pred_check
      _
    $region35: #{tpu_custom_call.1} parent=1 // pred_check_branch
      %367 = sbr.rel (0) target = $region37
    $region36: #{tpu_custom_call.1} parent=1 // pred_region
      %368 = dma.done [#allocation4], 256
    $region37: #{tpu_custom_call.1} parent=1 // pred_fallthru
      _
    %369 = vsyncpa [#allocation3], 1
    %370 = vsyncpa [#allocation6], 1
    %371 = vsyncpa [#allocation4], 1

</llo_original>
